<compile_context>
chip_gen: v7x
topology: tpu7x:2x2x1
jax: 0.10.0
libtpu: 0.0.40
codegen_flags: <defaults>
</compile_context>

<pallas_src>
import jax
import jax.numpy as jnp
from jax.experimental import pallas as pl
from jax.experimental.pallas import tpu as pltpu

LATENT_DIM = 3
NUM_CLASSES = 10
EMB_DIM = 16
HIDDEN_DIM = 128
OUT_DIM = 28 * 28        # 784
OUT_DIM_PAD = 896        # 7 * 128 -> lane-dense output
MAX_TILE_B = 256         # batch tile (rows); sized against v7x 64 MiB VMEM


def decoder_kernel(latent_ref, t_ref, w_h_lat_ref, w_out_ref, b_out_ref, out_ref):
    # hidden = relu(latent @ W_h[:3] + (emb @ W_h[3:] + b_h)[label])
    # The K=3 contraction is 3 broadcast FMAs on the VPU (MXU not worth it);
    # the label term arrives precomputed in t_ref.
    lat = latent_ref[...]                       # (tile_b, 3)   f32
    acc = t_ref[...]                            # (tile_b, 128) f32
    for k in range(LATENT_DIM):                 # static unroll
        acc = acc + lat[:, k:k + 1] * w_h_lat_ref[k:k + 1, :]
    hidden = jnp.maximum(acc, 0.0)

    # output = sigmoid(hidden @ W_out + b_out); bf16 operands, f32 accumulate.
    logits = jnp.dot(hidden.astype(jnp.bfloat16), w_out_ref[...],
                     preferred_element_type=jnp.float32) + b_out_ref[...]
    out_ref[...] = jax.nn.sigmoid(logits)       # exp/recip go to the EUP slot


def init_params(key):
    """Deterministic param init (PyTorch-Linear-style uniform bounds)."""
    ks = jax.random.split(key, 6)

    def linear(kw, kb, fan_in, fan_out):
        bound = 1.0 / jnp.sqrt(fan_in)
        w = jax.random.uniform(kw, (fan_in, fan_out), jnp.float32, -bound, bound)
        b = jax.random.uniform(kb, (fan_out,), jnp.float32, -bound, bound)
        return w, b

    w_emb, b_emb = linear(ks[0], ks[1], NUM_CLASSES, EMB_DIM)
    w_h, b_h = linear(ks[2], ks[3], LATENT_DIM + EMB_DIM, HIDDEN_DIM)
    w_out, b_out = linear(ks[4], ks[5], HIDDEN_DIM, OUT_DIM)
    return dict(w_emb=w_emb, b_emb=b_emb, w_h=w_h, b_h=b_h,
                w_out=w_out, b_out=b_out)


def _prep_params(params):
    """Fold the label path into a per-class table; pad / cast the output layer."""
    # one_hot(c) @ W_emb == W_emb[c]  (exact)
    emb_table = jnp.maximum(params["w_emb"] + params["b_emb"][None, :], 0.0)   # (10, 16)
    label_table = emb_table @ params["w_h"][LATENT_DIM:, :] + params["b_h"][None, :]  # (10, 128)
    w_h_lat = params["w_h"][:LATENT_DIM, :]                                    # (3, 128)

    w_out_pad = jnp.zeros((HIDDEN_DIM, OUT_DIM_PAD), jnp.float32)
    w_out_pad = w_out_pad.at[:, :OUT_DIM].set(params["w_out"])
    b_out_pad = jnp.zeros((1, OUT_DIM_PAD), jnp.float32)
    b_out_pad = b_out_pad.at[:, :OUT_DIM].set(params["b_out"])

    return label_table, w_h_lat, w_out_pad.astype(jnp.bfloat16), b_out_pad


def decoder_forward(latent_vector, label, params):
    label_table, w_h_lat, w_out_bf16, b_out = _prep_params(params)

    B = latent_vector.shape[0]
    t = jnp.take(label_table, label, axis=0)            # (B, 128) row gather

    # Batch tiling: sublane-aligned tile, pad B so every grid block is full.
    tile_b = MAX_TILE_B if B >= MAX_TILE_B else max(8, ((B + 7) // 8) * 8)
    b_pad = ((B + tile_b - 1) // tile_b) * tile_b

    lat = latent_vector.astype(jnp.float32)
    if b_pad != B:
        lat = jnp.pad(lat, ((0, b_pad - B), (0, 0)))
        t = jnp.pad(t, ((0, b_pad - B), (0, 0)))

    out_pad = pl.pallas_call(
        decoder_kernel,
        out_shape=jax.ShapeDtypeStruct((b_pad, OUT_DIM_PAD), jnp.float32),
        grid_spec=pltpu.PrefetchScalarGridSpec(
            num_scalar_prefetch=0,
            grid=(b_pad // tile_b,),
            in_specs=[
                pl.BlockSpec((tile_b, LATENT_DIM), lambda i: (i, 0)),
                pl.BlockSpec((tile_b, HIDDEN_DIM), lambda i: (i, 0)),
                # Weights: same block for every grid step -> stay VMEM-resident.
                pl.BlockSpec((LATENT_DIM, HIDDEN_DIM), lambda i: (0, 0)),
                pl.BlockSpec((HIDDEN_DIM, OUT_DIM_PAD), lambda i: (0, 0)),
                pl.BlockSpec((1, OUT_DIM_PAD), lambda i: (0, 0)),
            ],
            out_specs=pl.BlockSpec((tile_b, OUT_DIM_PAD), lambda i: (i, 0)),
        ),
        compiler_params=pltpu.CompilerParams(
            dimension_semantics=("parallel",)),
    )(lat, t, w_h_lat, w_out_bf16, b_out)

    # Drop batch + lane padding; torch: output.view(-1, 1, 28, 28) -> NCHW.
    return out_pad[:B, :OUT_DIM].reshape(B, 1, 28, 28)


if __name__ == "__main__":
    key = jax.random.PRNGKey(0)
    k_params, k_latent, k_label = jax.random.split(key, 3)

    params = init_params(k_params)

    B = 8
    latent = jax.random.normal(k_latent, (B, LATENT_DIM), jnp.float32)
    label = jax.random.randint(k_label, (B,), 0, NUM_CLASSES, jnp.int32)

    out = decoder_forward(latent, label, params)
    out = jax.block_until_ready(out)

    assert out.shape == (B, 1, 28, 28), out.shape
    assert out.dtype == jnp.float32

    # Sanity check against the pure-f32 JAX reference (matches the torch module).
    # bf16 W_out in the kernel => relaxed absolute tolerance.
    onehot = jax.nn.one_hot(label, NUM_CLASSES, dtype=jnp.float32)
    emb = jax.nn.relu(onehot @ params["w_emb"] + params["b_emb"])
    concat = jnp.concatenate([latent, emb], axis=1)
    hidden = jax.nn.relu(concat @ params["w_h"] + params["b_h"])
    ref = jax.nn.sigmoid(hidden @ params["w_out"] + params["b_out"]).reshape(B, 1, 28, 28)
    assert jnp.max(jnp.abs(out - ref)) < 5e-3, float(jnp.max(jnp.abs(out - ref)))

    print("KERNEL_OK")
</pallas_src>

<mosaic_0001>
module attributes {stable_mosaic.version = 11 : i64} {
  func.func @decoder_kernel(%arg0: i32, %arg1: memref<8x3xf32, #tpu.memory_space<vmem>>, %arg2: memref<8x128xf32, #tpu.memory_space<vmem>>, %arg3: memref<3x128xf32, #tpu.memory_space<vmem>>, %arg4: memref<128x896xbf16, #tpu.memory_space<vmem>>, %arg5: memref<1x896xf32, #tpu.memory_space<vmem>>, %arg6: memref<8x896xf32, #tpu.memory_space<vmem>>) attributes {dimension_semantics = [#tpu.dimension_semantics<parallel>], iteration_bounds = array<i64: 1>, scalar_prefetch = 0 : i64, scratch_operands = 0 : i64, tpu.core_type = #tpu.core_type<tc>, window_params = [{transform_indices = @transform_0, window_bounds = array<i64: 8, 3>}, {transform_indices = @transform_1, window_bounds = array<i64: 8, 128>}, {pipeline_mode = #tpu.pipeline_mode<synchronous>, transform_indices = @transform_2, window_bounds = array<i64: 3, 128>}, {pipeline_mode = #tpu.pipeline_mode<synchronous>, transform_indices = @transform_3, window_bounds = array<i64: 128, 896>}, {pipeline_mode = #tpu.pipeline_mode<synchronous>, transform_indices = @transform_4, window_bounds = array<i64: 1, 896>}, {transform_indices = @transform_5, window_bounds = array<i64: 8, 896>}]} {
    %c0 = arith.constant 0 : index
    %c0_0 = arith.constant 0 : index
    %0 = vector.load %arg1[%c0, %c0_0] : memref<8x3xf32, #tpu.memory_space<vmem>>, vector<8x3xf32>
    %c0_1 = arith.constant 0 : index
    %c0_2 = arith.constant 0 : index
    %1 = vector.load %arg2[%c0_1, %c0_2] : memref<8x128xf32, #tpu.memory_space<vmem>>, vector<8x128xf32>
    %2 = vector.extract_strided_slice %0 {offsets = [0, 0], sizes = [8, 1], strides = [1, 1]} : vector<8x3xf32> to vector<8x1xf32>
    %c0_3 = arith.constant 0 : index
    %c0_4 = arith.constant 0 : index
    %3 = vector.load %arg3[%c0_3, %c0_4] : memref<3x128xf32, #tpu.memory_space<vmem>>, vector<1x128xf32>
    %4 = vector.broadcast %2 : vector<8x1xf32> to vector<8x128xf32>
    %5 = vector.broadcast %3 : vector<1x128xf32> to vector<8x128xf32>
    %6 = arith.mulf %4, %5 : vector<8x128xf32>
    %7 = arith.addf %1, %6 : vector<8x128xf32>
    %8 = vector.extract_strided_slice %0 {offsets = [0, 1], sizes = [8, 1], strides = [1, 1]} : vector<8x3xf32> to vector<8x1xf32>
    %c1 = arith.constant 1 : index
    %c0_5 = arith.constant 0 : index
    %9 = vector.load %arg3[%c1, %c0_5] : memref<3x128xf32, #tpu.memory_space<vmem>>, vector<1x128xf32>
    %10 = vector.broadcast %8 : vector<8x1xf32> to vector<8x128xf32>
    %11 = vector.broadcast %9 : vector<1x128xf32> to vector<8x128xf32>
    %12 = arith.mulf %10, %11 : vector<8x128xf32>
    %13 = arith.addf %7, %12 : vector<8x128xf32>
    %14 = vector.extract_strided_slice %0 {offsets = [0, 2], sizes = [8, 1], strides = [1, 1]} : vector<8x3xf32> to vector<8x1xf32>
    %c2 = arith.constant 2 : index
    %c0_6 = arith.constant 0 : index
    %15 = vector.load %arg3[%c2, %c0_6] : memref<3x128xf32, #tpu.memory_space<vmem>>, vector<1x128xf32>
    %16 = vector.broadcast %14 : vector<8x1xf32> to vector<8x128xf32>
    %17 = vector.broadcast %15 : vector<1x128xf32> to vector<8x128xf32>
    %18 = arith.mulf %16, %17 : vector<8x128xf32>
    %19 = arith.addf %13, %18 : vector<8x128xf32>
    %cst = arith.constant 0.000000e+00 : f32
    %20 = vector.broadcast %cst : f32 to vector<8x128xf32>
    %21 = arith.maximumf %19, %20 : vector<8x128xf32>
    %22 = arith.truncf %21 : vector<8x128xf32> to vector<8x128xbf16>
    %c0_7 = arith.constant 0 : index
    %c0_8 = arith.constant 0 : index
    %23 = vector.load %arg4[%c0_7, %c0_8] : memref<128x896xbf16, #tpu.memory_space<vmem>>, vector<128x896xbf16>
    %cst_9 = arith.constant dense<0.000000e+00> : vector<8x896xf32>
    %24 = tpu.matmul %22, %23, %cst_9 {dimension_numbers = #tpu.dot_dimension_numbers<[1], [0], [0], [1], [0, 0, 1, 1], [], []>} : vector<8x128xbf16>, vector<128x896xbf16>, vector<8x896xf32> -> vector<8x896xf32>
    %c0_10 = arith.constant 0 : index
    %c0_11 = arith.constant 0 : index
    %25 = vector.load %arg5[%c0_10, %c0_11] : memref<1x896xf32, #tpu.memory_space<vmem>>, vector<1x896xf32>
    %26 = vector.broadcast %25 : vector<1x896xf32> to vector<8x896xf32>
    %27 = arith.addf %24, %26 : vector<8x896xf32>
    %28 = arith.negf %27 : vector<8x896xf32>
    %29 = math.exp %28 : vector<8x896xf32>
    %cst_12 = arith.constant 1.000000e+00 : f32
    %30 = vector.broadcast %cst_12 : f32 to vector<8x896xf32>
    %31 = arith.addf %30, %29 : vector<8x896xf32>
    %32 = arith.divf %30, %31 : vector<8x896xf32>
    %c0_13 = arith.constant 0 : index
    %c0_14 = arith.constant 0 : index
    %33 = vector.load %arg6[%c0_13, %c0_14] : memref<8x896xf32, #tpu.memory_space<vmem>>, vector<8x896xf32>
    tpu.vector_store %arg6[%c0_13, %c0_14], %32 {strides = array<i32>} : memref<8x896xf32, #tpu.memory_space<vmem>>, vector<8x896xf32>,
    return
  }
  func.func @transform_0(%arg0: i32) -> (i32, i32) {
    %c0_i32 = arith.constant 0 : i32
    %c0_i32_0 = arith.constant 0 : i32
    return %arg0, %c0_i32 : i32, i32
  }
  func.func @transform_1(%arg0: i32) -> (i32, i32) {
    %c0_i32 = arith.constant 0 : i32
    %c0_i32_0 = arith.constant 0 : i32
    return %arg0, %c0_i32 : i32, i32
  }
  func.func @transform_2(%arg0: i32) -> (i32, i32) {
    %c0_i32 = arith.constant 0 : i32
    %c0_i32_0 = arith.constant 0 : i32
    %c0_i32_1 = arith.constant 0 : i32
    return %c0_i32, %c0_i32_0 : i32, i32
  }
  func.func @transform_3(%arg0: i32) -> (i32, i32) {
    %c0_i32 = arith.constant 0 : i32
    %c0_i32_0 = arith.constant 0 : i32
    %c0_i32_1 = arith.constant 0 : i32
    return %c0_i32, %c0_i32_0 : i32, i32
  }
  func.func @transform_4(%arg0: i32) -> (i32, i32) {
    %c0_i32 = arith.constant 0 : i32
    %c0_i32_0 = arith.constant 0 : i32
    %c0_i32_1 = arith.constant 0 : i32
    return %c0_i32, %c0_i32_0 : i32, i32
  }
  func.func @transform_5(%arg0: i32) -> (i32, i32) {
    %c0_i32 = arith.constant 0 : i32
    %c0_i32_0 = arith.constant 0 : i32
    return %arg0, %c0_i32 : i32, i32
  }
}

</mosaic_0001>

<llo_original>
// kernel: tpu_custom_call.1
$region0: #{tpu_custom_call.1}
  #allocation0 [shape = 'u32[]', space=smem, size = 0x4, offset = 0x4, fixed_abs, tag = 'smem constant byte address 0x4 - core index']
  #allocation1 [shape = 'u32[144,128]{1,0:T(1,128)}', space=vmem, size = 0x12000, scoped, tag = 'internal scratch']
  %s0 = inlined_call_operand.vmem [shape: f32[8,3], index: 0, kind: input, shape index: {}]
  %s1 = inlined_call_operand.vmem [shape: f32[8,128], index: 1, kind: input, shape index: {}]
  %s2 = inlined_call_operand.vmem [shape: f32[3,128], index: 2, kind: input, shape index: {}]
  %s3 = inlined_call_operand.hbm [shape: bf16[128,896], index: 3, kind: input, shape index: {}]
  %s4 = inlined_call_operand.vmem [shape: f32[1,896], index: 4, kind: input, shape index: {}]
  %s5 = inlined_call_operand.hbm [shape: f32[8,896], index: 5, kind: output, shape index: {}]
  %s6 = sld [smem:[#allocation0]]
  $region34: #{tpu_custom_call.1} parent=0
    _
  %s8 = ssub.s32 1, %s6
  %s9 = scalar_select 0, %s8, %s6
  $region1: #{tpu_custom_call.1} parent=0
    #allocation2 [shape = 'u8[229376]{0}', space=vmem, size = 0x38000, scoped, tag = 'input window, operand 3, single buffered']
    #allocation3 [shape = 's32[1]{0}', space=sflag, size = 0x4, scoped, tag = 'scoped memory for tpu_custom_call.1']
    #allocation4 [shape = 's32[1]{0}', space=sflag, size = 0x4, scoped, tag = 'scoped memory for tpu_custom_call.1']
    #allocation5 [shape = 'u8[28672]{0}', space=vmem, size = 0x7000, scoped, tag = 'output window, operand 0, single buffered']
    %10 = vsyncpa [#allocation3], 0
    %11 = vsyncpa [#allocation4], 0
    // Predicated region
    $region2: #{tpu_custom_call.1} parent=1 // pred_check
      _
    $region3: #{tpu_custom_call.1} parent=1 // pred_check_branch
      %13 = sbr.rel (0) target = $region5
    $region4: #{tpu_custom_call.1} parent=1 // pred_region
      _
    $region5: #{tpu_custom_call.1} parent=1 // pred_fallthru
      _
    // Predicated region
    $region6: #{tpu_custom_call.1} parent=1 // pred_check
      _
    $region7: #{tpu_custom_call.1} parent=1 // pred_check_branch
      %15 = sbr.rel (0) target = $region9
    $region8: #{tpu_custom_call.1} parent=1 // pred_region
      _
    $region9: #{tpu_custom_call.1} parent=1 // pred_fallthru
      _
    // Predicated region
    $region10: #{tpu_custom_call.1} parent=1 // pred_check
      _
    $region11: #{tpu_custom_call.1} parent=1 // pred_check_branch
      %17 = sbr.rel (0) target = $region13
    $region12: #{tpu_custom_call.1} parent=1 // pred_region
      _
    $region13: #{tpu_custom_call.1} parent=1 // pred_fallthru
      _
    // Predicated region
    $region14: #{tpu_custom_call.1} parent=1 // pred_check
      _
    $region15: #{tpu_custom_call.1} parent=1 // pred_check_branch
      %19 = sbr.rel (0) target = $region17
    $region16: #{tpu_custom_call.1} parent=1 // pred_region
      %s21 = ssub.s32 7168, 7168
      %22 = vsyncadd [#allocation3], %s21
      %s23 = sshll.u32 [#allocation2], 4
      %s24 = int_to_ptr.vmem [resolvable:$true] %s23
      %29 = dma.hbm_to_vmem [thread:$0]  %s3, 7168, %s24, [#allocation3], 448, 448, 28
    $region17: #{tpu_custom_call.1} parent=1 // pred_fallthru
      _
    // Predicated region
    $region18: #{tpu_custom_call.1} parent=1 // pred_check
      _
    $region19: #{tpu_custom_call.1} parent=1 // pred_check_branch
      %31 = sbr.rel (0) target = $region21
    $region20: #{tpu_custom_call.1} parent=1 // pred_region
      _
    $region21: #{tpu_custom_call.1} parent=1 // pred_fallthru
      _
    // Predicated region
    $region22: #{tpu_custom_call.1} parent=1 // pred_check
      _
    $region23: #{tpu_custom_call.1} parent=1 // pred_check_branch
      %33 = sbr.rel (0) target = $region25
    $region24: #{tpu_custom_call.1} parent=1 // pred_region
      %34 = dma.done [#allocation3], 7168
    $region25: #{tpu_custom_call.1} parent=1 // pred_fallthru
      _
    %v36 = vld [vmem:[%s0] sm:$0xff]
    %v37 = vld [vmem:[%s1] sm:$0xff]
    %v38 = vld [vmem:[%s2] sm:$0x1]
    %40 = vset.pattern.permute.xlu0 0
    %41 = vperm.xlu0 %40, %v36
    %v42 = vpop.permute.xlu0 %41
    %v44 = vlaneseq
    %v45 = vshrl.u32 %v44, 7
    %v46 = vsub.s32 0, %v45
    %v47 = vrot.slane %v38, %v46
    %v48 = vmul.f32 %v42, %v47
    %v49 = vadd.f32 %v37, %v48
    %v50 = vld [vmem:[%s2 + $0x1] sm:$0x1]
    %51 = vset.pattern.permute.xlu0 1
    %52 = vperm.xlu0 %51, %v36
    %v53 = vpop.permute.xlu0 %52
    %v55 = vlaneseq
    %v56 = vshrl.u32 %v55, 7
    %v57 = vsub.s32 0, %v56
    %v58 = vrot.slane %v50, %v57
    %v59 = vmul.f32 %v53, %v58
    %v60 = vadd.f32 %v49, %v59
    %v61 = vld [vmem:[%s2 + $0x2] sm:$0x1]
    %62 = vset.pattern.permute.xlu0 2
    %63 = vperm.xlu0 %62, %v36
    %v64 = vpop.permute.xlu0 %63
    %v66 = vlaneseq
    %v67 = vshrl.u32 %v66, 7
    %v68 = vsub.s32 0, %v67
    %v69 = vrot.slane %v61, %v68
    %v70 = vmul.f32 %v64, %v69
    %v71 = vadd.f32 %v60, %v70
    %v72 = vmax.f32 %v71, 0.0
    %v73 = vpack.c.bf16 %v72, %v72
    %v74 = vld [vmem:[#allocation2] sm:$0xff]
    %v75 = vld [vmem:[#allocation2 + $0x8] sm:$0xff]
    %v76 = vld [vmem:[#allocation2 + $0x10] sm:$0xff]
    %v77 = vld [vmem:[#allocation2 + $0x18] sm:$0xf]
    %v78 = vld [vmem:[#allocation2 + $0x1c] sm:$0xff]
    %v79 = vld [vmem:[#allocation2 + $0x24] sm:$0xff]
    %v80 = vld [vmem:[#allocation2 + $0x2c] sm:$0xff]
    %v81 = vld [vmem:[#allocation2 + $0x34] sm:$0xf]
    %v82 = vld [vmem:[#allocation2 + $0x38] sm:$0xff]
    %v83 = vld [vmem:[#allocation2 + $0x40] sm:$0xff]
    %v84 = vld [vmem:[#allocation2 + $0x48] sm:$0xff]
    %v85 = vld [vmem:[#allocation2 + $0x50] sm:$0xf]
    %v86 = vld [vmem:[#allocation2 + $0x54] sm:$0xff]
    %v87 = vld [vmem:[#allocation2 + $0x5c] sm:$0xff]
    %v88 = vld [vmem:[#allocation2 + $0x64] sm:$0xff]
    %v89 = vld [vmem:[#allocation2 + $0x6c] sm:$0xf]
    %v90 = vld [vmem:[#allocation2 + $0x70] sm:$0xff]
    %v91 = vld [vmem:[#allocation2 + $0x78] sm:$0xff]
    %v92 = vld [vmem:[#allocation2 + $0x80] sm:$0xff]
    %v93 = vld [vmem:[#allocation2 + $0x88] sm:$0xf]
    %v94 = vld [vmem:[#allocation2 + $0x8c] sm:$0xff]
    %v95 = vld [vmem:[#allocation2 + $0x94] sm:$0xff]
    %v96 = vld [vmem:[#allocation2 + $0x9c] sm:$0xff]
    %v97 = vld [vmem:[#allocation2 + $0xa4] sm:$0xf]
    %v98 = vld [vmem:[#allocation2 + $0xa8] sm:$0xff]
    %v99 = vld [vmem:[#allocation2 + $0xb0] sm:$0xff]
    %v100 = vld [vmem:[#allocation2 + $0xb8] sm:$0xff]
    %v101 = vld [vmem:[#allocation2 + $0xc0] sm:$0xf]
    %v102 = vld [vmem:[#allocation2 + $0xc4] sm:$0xff]
    %v103 = vld [vmem:[#allocation2 + $0xcc] sm:$0xff]
    %v104 = vld [vmem:[#allocation2 + $0xd4] sm:$0xff]
    %v105 = vld [vmem:[#allocation2 + $0xdc] sm:$0xf]
    %v106 = vld [vmem:[#allocation2 + $0xe0] sm:$0xff]
    %v107 = vld [vmem:[#allocation2 + $0xe8] sm:$0xff]
    %v108 = vld [vmem:[#allocation2 + $0xf0] sm:$0xff]
    %v109 = vld [vmem:[#allocation2 + $0xf8] sm:$0xf]
    %v110 = vld [vmem:[#allocation2 + $0xfc] sm:$0xff]
    %v111 = vld [vmem:[#allocation2 + $0x104] sm:$0xff]
    %v112 = vld [vmem:[#allocation2 + $0x10c] sm:$0xff]
    %v113 = vld [vmem:[#allocation2 + $0x114] sm:$0xf]
    %v114 = vld [vmem:[#allocation2 + $0x118] sm:$0xff]
    %v115 = vld [vmem:[#allocation2 + $0x120] sm:$0xff]
    %v116 = vld [vmem:[#allocation2 + $0x128] sm:$0xff]
    %v117 = vld [vmem:[#allocation2 + $0x130] sm:$0xf]
    %v118 = vld [vmem:[#allocation2 + $0x134] sm:$0xff]
    %v119 = vld [vmem:[#allocation2 + $0x13c] sm:$0xff]
    %v120 = vld [vmem:[#allocation2 + $0x144] sm:$0xff]
    %v121 = vld [vmem:[#allocation2 + $0x14c] sm:$0xf]
    %v122 = vld [vmem:[#allocation2 + $0x150] sm:$0xff]
    %v123 = vld [vmem:[#allocation2 + $0x158] sm:$0xff]
    %v124 = vld [vmem:[#allocation2 + $0x160] sm:$0xff]
    %v125 = vld [vmem:[#allocation2 + $0x168] sm:$0xf]
    %v126 = vld [vmem:[#allocation2 + $0x16c] sm:$0xff]
    %v127 = vld [vmem:[#allocation2 + $0x174] sm:$0xff]
    %v128 = vld [vmem:[#allocation2 + $0x17c] sm:$0xff]
    %v129 = vld [vmem:[#allocation2 + $0x184] sm:$0xf]
    %v130 = vld [vmem:[#allocation2 + $0x188] sm:$0xff]
    %v131 = vld [vmem:[#allocation2 + $0x190] sm:$0xff]
    %v132 = vld [vmem:[#allocation2 + $0x198] sm:$0xff]
    %v133 = vld [vmem:[#allocation2 + $0x1a0] sm:$0xf]
    %v134 = vld [vmem:[#allocation2 + $0x1a4] sm:$0xff]
    %v135 = vld [vmem:[#allocation2 + $0x1ac] sm:$0xff]
    %v136 = vld [vmem:[#allocation2 + $0x1b4] sm:$0xff]
    %v137 = vld [vmem:[#allocation2 + $0x1bc] sm:$0xf]
    %v138 = vld [vmem:[%s4] sm:$0xff]
    %v140 = vlaneseq
    %v141 = vshrl.u32 %v140, 7
    %v142 = vsub.s32 0, %v141
    %v143 = vrot.slane %v138, %v142
    %v144 = vlaneseq
    %v145 = vshrl.u32 %v144, 7
    %v146 = vsub.s32 1, %v145
    %v147 = vrot.slane %v138, %v146
    %v148 = vlaneseq
    %v149 = vshrl.u32 %v148, 7
    %v150 = vsub.s32 2, %v149
    %v151 = vrot.slane %v138, %v150
    %v152 = vlaneseq
    %v153 = vshrl.u32 %v152, 7
    %v154 = vsub.s32 3, %v153
    %v155 = vrot.slane %v138, %v154
    %v156 = vlaneseq
    %v157 = vshrl.u32 %v156, 7
    %v158 = vsub.s32 4, %v157
    %v159 = vrot.slane %v138, %v158
    %v160 = vlaneseq
    %v161 = vshrl.u32 %v160, 7
    %v162 = vsub.s32 5, %v161
    %v163 = vrot.slane %v138, %v162
    %v164 = vlaneseq
    %v165 = vshrl.u32 %v164, 7
    %v166 = vsub.s32 6, %v165
    %v167 = vrot.slane %v138, %v166
    %v239 = vunpack.c.l.b16 %v74
    %v240 = vunpack.c.h.b16 %v74
    %v241 = vunpack.c.l.b16 %v75
    %v242 = vunpack.c.h.b16 %v75
    %v243 = vunpack.c.l.b16 %v76
    %v244 = vunpack.c.h.b16 %v76
    %v245 = vunpack.c.l.b16 %v77
    %v246 = vunpack.c.l.b16 %v78
    %v247 = vunpack.c.h.b16 %v78
    %v248 = vunpack.c.l.b16 %v79
    %v249 = vunpack.c.h.b16 %v79
    %v250 = vunpack.c.l.b16 %v80
    %v251 = vunpack.c.h.b16 %v80
    %v252 = vunpack.c.l.b16 %v81
    %v253 = vunpack.c.l.b16 %v82
    %v254 = vunpack.c.h.b16 %v82
    %v255 = vunpack.c.l.b16 %v83
    %v256 = vunpack.c.h.b16 %v83
    %v257 = vunpack.c.l.b16 %v84
    %v258 = vunpack.c.h.b16 %v84
    %v259 = vunpack.c.l.b16 %v85
    %v260 = vunpack.c.l.b16 %v86
    %v261 = vunpack.c.h.b16 %v86
    %v262 = vunpack.c.l.b16 %v87
    %v263 = vunpack.c.h.b16 %v87
    %v264 = vunpack.c.l.b16 %v88
    %v265 = vunpack.c.h.b16 %v88
    %v266 = vunpack.c.l.b16 %v89
    %v267 = vunpack.c.l.b16 %v90
    %v268 = vunpack.c.h.b16 %v90
    %v269 = vunpack.c.l.b16 %v91
    %v270 = vunpack.c.h.b16 %v91
    %v271 = vunpack.c.l.b16 %v92
    %v272 = vunpack.c.h.b16 %v92
    %v273 = vunpack.c.l.b16 %v93
    %v274 = vunpack.c.l.b16 %v94
    %v275 = vunpack.c.h.b16 %v94
    %v276 = vunpack.c.l.b16 %v95
    %v277 = vunpack.c.h.b16 %v95
    %v278 = vunpack.c.l.b16 %v96
    %v279 = vunpack.c.h.b16 %v96
    %v280 = vunpack.c.l.b16 %v97
    %v281 = vunpack.c.l.b16 %v98
    %v282 = vunpack.c.h.b16 %v98
    %v283 = vunpack.c.l.b16 %v99
    %v284 = vunpack.c.h.b16 %v99
    %v285 = vunpack.c.l.b16 %v100
    %v286 = vunpack.c.h.b16 %v100
    %v287 = vunpack.c.l.b16 %v101
    %v288 = vunpack.c.l.b16 %v102
    %v289 = vunpack.c.h.b16 %v102
    %v290 = vunpack.c.l.b16 %v103
    %v291 = vunpack.c.h.b16 %v103
    %v292 = vunpack.c.l.b16 %v104
    %v293 = vunpack.c.h.b16 %v104
    %v294 = vunpack.c.l.b16 %v105
    %v295 = vunpack.c.l.b16 %v106
    %v296 = vunpack.c.h.b16 %v106
    %v297 = vunpack.c.l.b16 %v107
    %v298 = vunpack.c.h.b16 %v107
    %v299 = vunpack.c.l.b16 %v108
    %v300 = vunpack.c.h.b16 %v108
    %v301 = vunpack.c.l.b16 %v109
    %v302 = vunpack.c.l.b16 %v110
    %v303 = vunpack.c.h.b16 %v110
    %v304 = vunpack.c.l.b16 %v111
    %v305 = vunpack.c.h.b16 %v111
    %v306 = vunpack.c.l.b16 %v112
    %v307 = vunpack.c.h.b16 %v112
    %v308 = vunpack.c.l.b16 %v113
    %v309 = vunpack.c.l.b16 %v114
    %v310 = vunpack.c.h.b16 %v114
    %v311 = vunpack.c.l.b16 %v115
    %v312 = vunpack.c.h.b16 %v115
    %v313 = vunpack.c.l.b16 %v116
    %v314 = vunpack.c.h.b16 %v116
    %v315 = vunpack.c.l.b16 %v117
    %v316 = vunpack.c.l.b16 %v118
    %v317 = vunpack.c.h.b16 %v118
    %v318 = vunpack.c.l.b16 %v119
    %v319 = vunpack.c.h.b16 %v119
    %v320 = vunpack.c.l.b16 %v120
    %v321 = vunpack.c.h.b16 %v120
    %v322 = vunpack.c.l.b16 %v121
    %v323 = vunpack.c.l.b16 %v122
    %v324 = vunpack.c.h.b16 %v122
    %v325 = vunpack.c.l.b16 %v123
    %v326 = vunpack.c.h.b16 %v123
    %v327 = vunpack.c.l.b16 %v124
    %v328 = vunpack.c.h.b16 %v124
    %v329 = vunpack.c.l.b16 %v125
    %v330 = vunpack.c.l.b16 %v126
    %v331 = vunpack.c.h.b16 %v126
    %v332 = vunpack.c.l.b16 %v127
    %v333 = vunpack.c.h.b16 %v127
    %v334 = vunpack.c.l.b16 %v128
    %v335 = vunpack.c.h.b16 %v128
    %v336 = vunpack.c.l.b16 %v129
    %v337 = vunpack.c.l.b16 %v130
    %v338 = vunpack.c.h.b16 %v130
    %v339 = vunpack.c.l.b16 %v131
    %v340 = vunpack.c.h.b16 %v131
    %v341 = vunpack.c.l.b16 %v132
    %v342 = vunpack.c.h.b16 %v132
    %v343 = vunpack.c.l.b16 %v133
    %v344 = vunpack.c.l.b16 %v134
    %v345 = vunpack.c.h.b16 %v134
    %v346 = vunpack.c.l.b16 %v135
    %v347 = vunpack.c.h.b16 %v135
    %v348 = vunpack.c.l.b16 %v136
    %v349 = vunpack.c.h.b16 %v136
    %v350 = vunpack.c.l.b16 %v137
    %v351 = vpack.c.b16 %v246, %v239
    %v352 = vpack.c.b16 %v247, %v240
    %v353 = vpack.c.b16 %v248, %v241
    %v354 = vpack.c.b16 %v249, %v242
    %v355 = vpack.c.b16 %v250, %v243
    %v356 = vpack.c.b16 %v251, %v244
    %v357 = vpack.c.b16 %v252, %v245
    %v358 = vpack.c.b16 %v260, %v253
    %v359 = vpack.c.b16 %v261, %v254
    %v360 = vpack.c.b16 %v262, %v255
    %v361 = vpack.c.b16 %v263, %v256
    %v362 = vpack.c.b16 %v264, %v257
    %v363 = vpack.c.b16 %v265, %v258
    %v364 = vpack.c.b16 %v266, %v259
    %v365 = vpack.c.b16 %v274, %v267
    %v366 = vpack.c.b16 %v275, %v268
    %v367 = vpack.c.b16 %v276, %v269
    %v368 = vpack.c.b16 %v277, %v270
    %v369 = vpack.c.b16 %v278, %v271
    %v370 = vpack.c.b16 %v279, %v272
    %v371 = vpack.c.b16 %v280, %v273
    %v372 = vpack.c.b16 %v288, %v281
    %v373 = vpack.c.b16 %v289, %v282
    %v374 = vpack.c.b16 %v290, %v283
    %v375 = vpack.c.b16 %v291, %v284
    %v376 = vpack.c.b16 %v292, %v285
    %v377 = vpack.c.b16 %v293, %v286
    %v378 = vpack.c.b16 %v294, %v287
    %v379 = vpack.c.b16 %v302, %v295
    %v380 = vpack.c.b16 %v303, %v296
    %v381 = vpack.c.b16 %v304, %v297
    %v382 = vpack.c.b16 %v305, %v298
    %v383 = vpack.c.b16 %v306, %v299
    %v384 = vpack.c.b16 %v307, %v300
    %v385 = vpack.c.b16 %v308, %v301
    %v386 = vpack.c.b16 %v316, %v309
    %v387 = vpack.c.b16 %v317, %v310
    %v388 = vpack.c.b16 %v318, %v311
    %v389 = vpack.c.b16 %v319, %v312
    %v390 = vpack.c.b16 %v320, %v313
    %v391 = vpack.c.b16 %v321, %v314
    %v392 = vpack.c.b16 %v322, %v315
    %v393 = vpack.c.b16 %v330, %v323
    %v394 = vpack.c.b16 %v331, %v324
    %v395 = vpack.c.b16 %v332, %v325
    %v396 = vpack.c.b16 %v333, %v326
    %v397 = vpack.c.b16 %v334, %v327
    %v398 = vpack.c.b16 %v335, %v328
    %v399 = vpack.c.b16 %v336, %v329
    %v400 = vpack.c.b16 %v344, %v337
    %v401 = vpack.c.b16 %v345, %v338
    %v402 = vpack.c.b16 %v346, %v339
    %v403 = vpack.c.b16 %v347, %v340
    %v404 = vpack.c.b16 %v348, %v341
    %v405 = vpack.c.b16 %v349, %v342
    %v406 = vpack.c.b16 %v350, %v343
    %463 = vmatprep.subr.bf16.mxu0 %v352
    %464 = vmatpush1.bf16.msra.mxu0 %v351
    %465 = vmatprep.subr.bf16.mxu0 %v359
    %466 = vmatpush1.bf16.msra.mxu0 %v358
    %467 = vmatprep.subr.bf16.mxu0 %v366
    %468 = vmatpush1.bf16.msra.mxu0 %v365
    %469 = vmatprep.subr.bf16.mxu0 %v373
    %470 = vmatpush1.bf16.msra.mxu0 %v372
    %471 = vmatprep.subr.bf16.mxu0 %v380
    %472 = vmatpush1.bf16.msra.mxu0 %v379
    %473 = vmatprep.subr.bf16.mxu0 %v387
    %474 = vmatpush1.bf16.msra.mxu0 %v386
    %475 = vmatprep.subr.bf16.mxu0 %v394
    %476 = vmatpush1.bf16.msra.mxu0 %v393
    %477 = vmatprep.subr.bf16.mxu0 %v401
    %478 = vmatpush1.bf16.msra.mxu0 %v400
    %479 = vmatprep.subr.bf16.mxu0 0
    %480 = vmatpush1.bf16.msra.mxu0 0
    %481 = vmatprep.subr.bf16.mxu0 0
    %482 = vmatpush1.bf16.msra.mxu0 0
    %483 = vmatprep.subr.bf16.mxu0 0
    %484 = vmatpush1.bf16.msra.mxu0 0
    %485 = vmatprep.subr.bf16.mxu0 0
    %486 = vmatpush1.bf16.msra.mxu0 0
    %487 = vmatprep.subr.bf16.mxu0 0
    %488 = vmatpush1.bf16.msra.mxu0 0
    %489 = vmatprep.subr.bf16.mxu0 0
    %490 = vmatpush1.bf16.msra.mxu0 0
    %491 = vmatprep.subr.bf16.mxu0 0
    %492 = vmatpush1.bf16.msra.mxu0 0
    %493 = vmatprep.subr.bf16.mxu0 0
    %494 = vmatpush1.bf16.msra.mxu0 0
    %495 = vmatprep.mubr.bf16.mxu0 0
    %496 = vmatmul.mubr.bf16.gmra.mrb[0].mxu0 %v73
    %v497 = vpop.f32.mrb[0].mxu0
    %v498 = vadd.f32 %v143, %v497
    %v499 = vpop.f32.mrb[0].mxu0
    %v500 = vadd.f32 %v147, %v499
    %v501 = vpop.f32.mrb[0].mxu0
    %v502 = vpop.f32.mrb[0].mxu0
    %503 = vdwg.mxu0
    %504 = vmatprep.subr.bf16.mxu0 %v354
    %505 = vmatpush1.bf16.msra.mxu0 %v353
    %506 = vmatprep.subr.bf16.mxu0 %v361
    %507 = vmatpush1.bf16.msra.mxu0 %v360
    %508 = vmatprep.subr.bf16.mxu0 %v368
    %509 = vmatpush1.bf16.msra.mxu0 %v367
    %510 = vmatprep.subr.bf16.mxu0 %v375
    %511 = vmatpush1.bf16.msra.mxu0 %v374
    %512 = vmatprep.subr.bf16.mxu0 %v382
    %513 = vmatpush1.bf16.msra.mxu0 %v381
    %514 = vmatprep.subr.bf16.mxu0 %v389
    %515 = vmatpush1.bf16.msra.mxu0 %v388
    %516 = vmatprep.subr.bf16.mxu0 %v396
    %517 = vmatpush1.bf16.msra.mxu0 %v395
    %518 = vmatprep.subr.bf16.mxu0 %v403
    %519 = vmatpush1.bf16.msra.mxu0 %v402
    %520 = vmatprep.subr.bf16.mxu0 0
    %521 = vmatpush1.bf16.msra.mxu0 0
    %522 = vmatprep.subr.bf16.mxu0 0
    %523 = vmatpush1.bf16.msra.mxu0 0
    %524 = vmatprep.subr.bf16.mxu0 0
    %525 = vmatpush1.bf16.msra.mxu0 0
    %526 = vmatprep.subr.bf16.mxu0 0
    %527 = vmatpush1.bf16.msra.mxu0 0
    %528 = vmatprep.subr.bf16.mxu0 0
    %529 = vmatpush1.bf16.msra.mxu0 0
    %530 = vmatprep.subr.bf16.mxu0 0
    %531 = vmatpush1.bf16.msra.mxu0 0
    %532 = vmatprep.subr.bf16.mxu0 0
    %533 = vmatpush1.bf16.msra.mxu0 0
    %534 = vmatprep.subr.bf16.mxu0 0
    %535 = vmatpush1.bf16.msra.mxu0 0
    %536 = vmatprep.mubr.bf16.mxu0 0
    %537 = vmatmul.mubr.bf16.gmra.mrb[0].mxu0 %v73
    %v538 = vpop.f32.mrb[0].mxu0
    %v539 = vadd.f32 %v151, %v538
    %v540 = vpop.f32.mrb[0].mxu0
    %v541 = vadd.f32 %v155, %v540
    %v542 = vpop.f32.mrb[0].mxu0
    %v543 = vpop.f32.mrb[0].mxu0
    %544 = vdwg.mxu0
    %545 = vmatprep.subr.bf16.mxu0 %v356
    %546 = vmatpush1.bf16.msra.mxu0 %v355
    %547 = vmatprep.subr.bf16.mxu0 %v363
    %548 = vmatpush1.bf16.msra.mxu0 %v362
    %549 = vmatprep.subr.bf16.mxu0 %v370
    %550 = vmatpush1.bf16.msra.mxu0 %v369
    %551 = vmatprep.subr.bf16.mxu0 %v377
    %552 = vmatpush1.bf16.msra.mxu0 %v376
    %553 = vmatprep.subr.bf16.mxu0 %v384
    %554 = vmatpush1.bf16.msra.mxu0 %v383
    %555 = vmatprep.subr.bf16.mxu0 %v391
    %556 = vmatpush1.bf16.msra.mxu0 %v390
    %557 = vmatprep.subr.bf16.mxu0 %v398
    %558 = vmatpush1.bf16.msra.mxu0 %v397
    %559 = vmatprep.subr.bf16.mxu0 %v405
    %560 = vmatpush1.bf16.msra.mxu0 %v404
    %561 = vmatprep.subr.bf16.mxu0 0
    %562 = vmatpush1.bf16.msra.mxu0 0
    %563 = vmatprep.subr.bf16.mxu0 0
    %564 = vmatpush1.bf16.msra.mxu0 0
    %565 = vmatprep.subr.bf16.mxu0 0
    %566 = vmatpush1.bf16.msra.mxu0 0
    %567 = vmatprep.subr.bf16.mxu0 0
    %568 = vmatpush1.bf16.msra.mxu0 0
    %569 = vmatprep.subr.bf16.mxu0 0
    %570 = vmatpush1.bf16.msra.mxu0 0
    %571 = vmatprep.subr.bf16.mxu0 0
    %572 = vmatpush1.bf16.msra.mxu0 0
    %573 = vmatprep.subr.bf16.mxu0 0
    %574 = vmatpush1.bf16.msra.mxu0 0
    %575 = vmatprep.subr.bf16.mxu0 0
    %576 = vmatpush1.bf16.msra.mxu0 0
    %577 = vmatprep.mubr.bf16.mxu0 0
    %578 = vmatmul.mubr.bf16.gmra.mrb[0].mxu0 %v73
    %v579 = vpop.f32.mrb[0].mxu0
    %v580 = vadd.f32 %v159, %v579
    %v581 = vpop.f32.mrb[0].mxu0
    %v582 = vadd.f32 %v163, %v581
    %v583 = vpop.f32.mrb[0].mxu0
    %v584 = vpop.f32.mrb[0].mxu0
    %585 = vdwg.mxu0
    %586 = vmatprep.subr.bf16.mxu0 0
    %587 = vmatpush1.bf16.msra.mxu0 %v357
    %588 = vmatprep.subr.bf16.mxu0 0
    %589 = vmatpush1.bf16.msra.mxu0 %v364
    %590 = vmatprep.subr.bf16.mxu0 0
    %591 = vmatpush1.bf16.msra.mxu0 %v371
    %592 = vmatprep.subr.bf16.mxu0 0
    %593 = vmatpush1.bf16.msra.mxu0 %v378
    %594 = vmatprep.subr.bf16.mxu0 0
    %595 = vmatpush1.bf16.msra.mxu0 %v385
    %596 = vmatprep.subr.bf16.mxu0 0
    %597 = vmatpush1.bf16.msra.mxu0 %v392
    %598 = vmatprep.subr.bf16.mxu0 0
    %599 = vmatpush1.bf16.msra.mxu0 %v399
    %600 = vmatprep.subr.bf16.mxu0 0
    %601 = vmatpush1.bf16.msra.mxu0 %v406
    %602 = vmatprep.subr.bf16.mxu0 0
    %603 = vmatpush1.bf16.msra.mxu0 0
    %604 = vmatprep.subr.bf16.mxu0 0
    %605 = vmatpush1.bf16.msra.mxu0 0
    %606 = vmatprep.subr.bf16.mxu0 0
    %607 = vmatpush1.bf16.msra.mxu0 0
    %608 = vmatprep.subr.bf16.mxu0 0
    %609 = vmatpush1.bf16.msra.mxu0 0
    %610 = vmatprep.subr.bf16.mxu0 0
    %611 = vmatpush1.bf16.msra.mxu0 0
    %612 = vmatprep.subr.bf16.mxu0 0
    %613 = vmatpush1.bf16.msra.mxu0 0
    %614 = vmatprep.subr.bf16.mxu0 0
    %615 = vmatpush1.bf16.msra.mxu0 0
    %616 = vmatprep.subr.bf16.mxu0 0
    %617 = vmatpush1.bf16.msra.mxu0 0
    %618 = vmatprep.mubr.bf16.mxu0 0
    %619 = vmatmul.mubr.bf16.gmra.mrb[0].mxu0 %v73
    %v620 = vpop.f32.mrb[0].mxu0
    %v621 = vadd.f32 %v167, %v620
    %v622 = vpop.f32.mrb[0].mxu0
    %v623 = vpop.f32.mrb[0].mxu0
    %v624 = vpop.f32.mrb[0].mxu0
    %625 = vdwg.mxu0
    %v626 = vxor.u32 %v498, 2147483648
    %v627 = vxor.u32 %v500, 2147483648
    %v628 = vxor.u32 %v539, 2147483648
    %v629 = vxor.u32 %v541, 2147483648
    %v630 = vxor.u32 %v580, 2147483648
    %v631 = vxor.u32 %v582, 2147483648
    %v632 = vxor.u32 %v621, 2147483648
    %v633 = vmul.f32 %v626, 1.442695
    %v634 = vpow.pop %v633
    %v635 = vmul.f32 %v627, 1.442695
    %v636 = vpow.pop %v635
    %v637 = vmul.f32 %v628, 1.442695
    %v638 = vpow.pop %v637
    %v639 = vmul.f32 %v629, 1.442695
    %v640 = vpow.pop %v639
    %v641 = vmul.f32 %v630, 1.442695
    %v642 = vpow.pop %v641
    %v643 = vmul.f32 %v631, 1.442695
    %v644 = vpow.pop %v643
    %v645 = vmul.f32 %v632, 1.442695
    %v646 = vpow.pop %v645
    %v647 = vadd.f32 %v634, 1.0
    %v648 = vadd.f32 %v636, 1.0
    %v649 = vadd.f32 %v638, 1.0
    %v650 = vadd.f32 %v640, 1.0
    %v651 = vadd.f32 %v642, 1.0
    %v652 = vadd.f32 %v644, 1.0
    %v653 = vadd.f32 %v646, 1.0
    %v654 = vrcp.pop %v647
    %v655 = vmul.f32 1.0, %v654
    %v656 = vrcp.pop %v648
    %v657 = vmul.f32 1.0, %v656
    %v658 = vrcp.pop %v649
    %v659 = vmul.f32 1.0, %v658
    %v660 = vrcp.pop %v650
    %v661 = vmul.f32 1.0, %v660
    %v662 = vrcp.pop %v651
    %v663 = vmul.f32 1.0, %v662
    %v664 = vrcp.pop %v652
    %v665 = vmul.f32 1.0, %v664
    %v666 = vrcp.pop %v653
    %v667 = vmul.f32 1.0, %v666
    %668 = vst [vmem:[#allocation5] sm:$0xff] %v655
    %669 = vst [vmem:[#allocation5 + $0x8] sm:$0xff] %v657
    %670 = vst [vmem:[#allocation5 + $0x10] sm:$0xff] %v659
    %671 = vst [vmem:[#allocation5 + $0x18] sm:$0xff] %v661
    %672 = vst [vmem:[#allocation5 + $0x20] sm:$0xff] %v663
    %673 = vst [vmem:[#allocation5 + $0x28] sm:$0xff] %v665
    %674 = vst [vmem:[#allocation5 + $0x30] sm:$0xff] %v667
    // Predicated region
    $region26: #{tpu_custom_call.1} parent=1 // pred_check
      _
    $region27: #{tpu_custom_call.1} parent=1 // pred_check_branch
      %676 = sbr.rel (0) target = $region29
    $region28: #{tpu_custom_call.1} parent=1 // pred_region
      %s678 = ssub.s32 896, 896
      %679 = vsyncadd [#allocation4], %s678
      %s681 = sshll.u32 [#allocation5], 4
      %s682 = int_to_ptr.vmem [resolvable:$true] %s681
      %684 = dma.vmem_to_hbm [thread:$0]  %s682, 896, %s5, [#allocation4]
    $region29: #{tpu_custom_call.1} parent=1 // pred_fallthru
      _
    // Predicated region
    $region30: #{tpu_custom_call.1} parent=1 // pred_check
      _
    $region31: #{tpu_custom_call.1} parent=1 // pred_check_branch
      %686 = sbr.rel (0) target = $region33
    $region32: #{tpu_custom_call.1} parent=1 // pred_region
      %687 = dma.done [#allocation4], 896
    $region33: #{tpu_custom_call.1} parent=1 // pred_fallthru
      _
    %688 = vsyncpa [#allocation3], 1
    %689 = vsyncpa [#allocation4], 1

</llo_original>
